<compile_context>
chip_gen: v6e
topology: v6e:2x2x1
jax: 0.10.0
libtpu: 0.0.40
codegen_flags: <defaults>
</compile_context>

<pallas_src>
import jax
import jax.numpy as jnp
from jax import lax
from jax.experimental import pallas as pl
from jax.experimental.pallas import tpu as pltpu


def _round_up(v: int, m: int) -> int:
    return ((v + m - 1) // m) * m


def _gat_layer(x, mask, w_ref, vs_ref, b_ref, h):
    """One GATConv (heads=1, concat=False) on VMEM-resident, lane/row-padded values."""
    xb = x.astype(jnp.bfloat16)                       # bf16 MXU operands, f32 accumulate
    # Fused projection: columns [:h] are h_src = x@W_src; column h is the folded
    # a_dst = x @ (W_dst att_dst^T).  One MXU pass instead of two.
    h_ext = jnp.dot(xb, w_ref[...], preferred_element_type=jnp.float32)      # [N, Hp]
    a_dst = h_ext[:, h:h + 1]                                                # [N, 1]
    # Per-source score produced lane-major directly (A@B^T form, native on the MXU,
    # avoids a sublane->lane transpose).
    a_src = lax.dot_general(vs_ref[...], xb, (((1,), (1,)), ((), ())),
                            preferred_element_type=jnp.float32)              # [1, N]

    e = a_dst + a_src                                                        # [N, N]
    e = jnp.where(e >= 0.0, e, 0.2 * e)           # LeakyReLU(0.2), GATConv default
    e = jnp.where(mask, e, jnp.float32(-1e30))    # mask non-edges (incl. row/col padding)
    m = jnp.max(e, axis=-1, keepdims=True)
    # Masked entries underflow to exactly 0 in exp(); every valid row has a self-loop so
    # m is finite and denom >= 1 -> no NaN.  Padded rows give finite garbage, sliced off.
    p = jnp.exp(e - m)
    denom = jnp.sum(p, axis=-1, keepdims=True)
    alpha = p * pl.reciprocal(denom, approx=True)                            # [N, N]

    # Aggregate messages over incoming edges (bf16 MXU, f32 acc) + bias.  Column h of the
    # result aggregates the folded a_dst column (garbage), but it is multiplied by the
    # next layer's zero-padded weight rows / sliced off by the wrapper epilogue.
    return jnp.dot(alpha.astype(jnp.bfloat16), h_ext.astype(jnp.bfloat16),
                   preferred_element_type=jnp.float32) + b_ref[...]


def _make_gat_kernel(n_layers, h):
    def kernel(x_ref, adj_ref, *refs):
        o_ref = refs[-1]
        # Integer-only mask path: no N^2 int8->f32 convert / f32 temporary.
        mask = adj_ref[...].astype(jnp.int32) != 0                           # [N, N]
        x = x_ref[...]
        for i in range(n_layers):
            w_ref, vs_ref, b_ref = refs[3 * i:3 * i + 3]
            x = _gat_layer(x, mask, w_ref, vs_ref, b_ref, h)
            if i != n_layers - 1:
                x = jnp.maximum(x, 0.0)           # F.relu between layers
        o_ref[...] = x
    return kernel


def _pack_layer(w_src, w_dst, att_src, att_dst, bias, in_pad, out_pad):
    """Fold att_src/att_dst into the weights, zero-pad to 128 lanes, cast MXU weights bf16."""
    fin, h = w_src.shape
    v_src = w_src @ att_src.reshape(-1, 1)                                   # [Fin, 1]
    v_dst = w_dst @ att_dst.reshape(-1, 1)                                   # [Fin, 1]
    w_pad = jnp.zeros((in_pad, out_pad), jnp.float32)
    w_pad = w_pad.at[:fin, :h].set(w_src)
    w_pad = w_pad.at[:fin, h].set(v_dst[:, 0])       # fold a_dst projection into column h
    vs_row = jnp.zeros((1, in_pad), jnp.float32).at[:, :fin].set(v_src.T)    # [1, Fin_pad]
    b_row = jnp.zeros((1, out_pad), jnp.float32).at[:, :h].set(bias.reshape(1, -1))
    return w_pad.astype(jnp.bfloat16), vs_row.astype(jnp.bfloat16), b_row


@jax.jit
def gat_forward(x, adj, params):
    """Full-neighborhood GAT forward (x_target == x, size[1] == N), all layers fused."""
    n, feat_dim = x.shape
    n_layers = len(params)
    h = params[0][0].shape[1]                    # hidden_dim (same for every layer)
    n_pad = _round_up(n, 128)                    # dense lanes for e/p/alpha, full MXU K
    fin_pad = _round_up(feat_dim, 128)
    h_pad = _round_up(h + 1, 128)                # +1 guarantees a free column for a_dst

    x_pad = jnp.zeros((n_pad, fin_pad), jnp.bfloat16).at[:n, :feat_dim].set(
        x.astype(jnp.bfloat16))
    # (adj != 0) first so fractional / weighted adjacency is not truncated by the int8 cast.
    adj_pad = jnp.zeros((n_pad, n_pad), jnp.int8).at[:n, :n].set(
        (adj != 0).astype(jnp.int8))

    packed = []
    for i in range(n_layers):
        in_pad = fin_pad if i == 0 else h_pad
        packed.extend(_pack_layer(*params[i], in_pad, h_pad))

    # Scoped-VMEM budget: int8 adj + a handful of live [N,N] f32 temporaries (e/p/alpha/
    # mask) + projections + packed weights, with 2x headroom.  Clamped to 48 MiB so the
    # same plan stays inside v7x's 64 MiB physical VMEM.
    n2 = n_pad * n_pad
    w_bytes = sum(int(a.size) * a.dtype.itemsize for a in packed)
    est = n2 + 5 * n2 * 4 + 2 * n_pad * h_pad * 4 + n_pad * fin_pad * 2 + w_bytes
    vmem_limit = int(min(max(2 * est, 16 * 1024 * 1024), 48 * 1024 * 1024))

    out_pad = pl.pallas_call(
        _make_gat_kernel(n_layers, h),
        out_shape=jax.ShapeDtypeStruct((n_pad, h_pad), jnp.float32),
        compiler_params=pltpu.CompilerParams(vmem_limit_bytes=vmem_limit),
    )(x_pad, adj_pad, *packed)
    return out_pad[:n, :h]


def xavier_uniform(key, fan_in, fan_out, shape):
    bound = jnp.sqrt(6.0 / (fan_in + fan_out))
    return jax.random.uniform(key, shape, jnp.float32, -bound, bound)


def init_gat_params(key, feat_dim, hidden_dim, n_layers=2):
    """Deterministic parameter init mimicking GAT.__init__ (xavier=True, heads=1)."""
    params = []
    for i in range(n_layers):
        start_dim = hidden_dim if i else feat_dim
        key, k1, k2, k3, k4 = jax.random.split(key, 5)
        w_src = xavier_uniform(k1, start_dim, hidden_dim, (start_dim, hidden_dim))
        w_dst = xavier_uniform(k2, start_dim, hidden_dim, (start_dim, hidden_dim))
        att_src = xavier_uniform(k3, hidden_dim, 1, (1, hidden_dim))
        att_dst = xavier_uniform(k4, hidden_dim, 1, (1, hidden_dim))
        bias = jnp.zeros((1, hidden_dim), jnp.float32)
        params.append((w_src, w_dst, att_src, att_dst, bias))
    return params


def gat_reference(x, adj, params):
    """Pure-JAX f32 reference (unfused, un-padded) for a correctness check."""
    mask = adj > 0
    out = x
    for i, (w_src, w_dst, att_src, att_dst, bias) in enumerate(params):
        h_src = out @ w_src
        h_dst = out @ w_dst
        a_src = jnp.sum(h_src * att_src, axis=-1)
        a_dst = jnp.sum(h_dst * att_dst, axis=-1)
        e = a_dst[:, None] + a_src[None, :]
        e = jnp.where(e >= 0.0, e, 0.2 * e)
        e = jnp.where(mask, e, -jnp.inf)
        alpha = jax.nn.softmax(e, axis=-1)
        out = alpha @ h_src + bias
        if i != len(params) - 1:
            out = jax.nn.relu(out)
    return out


if __name__ == "__main__":
    key = jax.random.PRNGKey(0)
    N, feat_dim, hidden_dim, n_layers = 64, 32, 32, 2

    k_x, k_adj, k_params = jax.random.split(key, 3)

    # Node features.
    x = jax.random.normal(k_x, (N, feat_dim), jnp.float32)

    # Random sparse undirected adjacency + self loops, as a dense int8 mask
    # (adj[i, j] = 1  <=>  edge from source j to target i).
    a = jax.random.uniform(k_adj, (N, N)) < 0.1
    adj = (a | a.T | jnp.eye(N, dtype=bool)).astype(jnp.int8)

    params = init_gat_params(k_params, feat_dim, hidden_dim, n_layers)

    out = gat_forward(x, adj, params)
    jax.block_until_ready(out)

    assert out.shape == (N, hidden_dim) and out.dtype == jnp.float32
    assert bool(jnp.all(jnp.isfinite(out)))

    # bf16 MXU datapath + approximate reciprocal => slightly looser tolerance than f32.
    ref = gat_reference(x, adj, params)
    assert bool(jnp.allclose(out, ref, rtol=5e-2, atol=5e-2)), float(
        jnp.max(jnp.abs(out - ref)))

    print("KERNEL_OK")
</pallas_src>

<mosaic_0001>
module attributes {stable_mosaic.version = 11 : i64} {
  func.func @kernel(%arg0: memref<128x128xbf16, #tpu.memory_space<vmem>>, %arg1: memref<128x128xi8, #tpu.memory_space<vmem>>, %arg2: memref<128x128xbf16, #tpu.memory_space<vmem>>, %arg3: memref<1x128xbf16, #tpu.memory_space<vmem>>, %arg4: memref<1x128xf32, #tpu.memory_space<vmem>>, %arg5: memref<128x128xbf16, #tpu.memory_space<vmem>>, %arg6: memref<1x128xbf16, #tpu.memory_space<vmem>>, %arg7: memref<1x128xf32, #tpu.memory_space<vmem>>, %arg8: memref<128x128xf32, #tpu.memory_space<vmem>>) attributes {dimension_semantics = [], scalar_prefetch = 0 : i64, scratch_operands = 0 : i64, tpu.core_type = #tpu.core_type<tc>} {
    %c0 = arith.constant 0 : index
    %c0_0 = arith.constant 0 : index
    %0 = vector.load %arg1[%c0, %c0_0] : memref<128x128xi8, #tpu.memory_space<vmem>>, vector<128x128xi8>
    %1 = arith.extsi %0 : vector<128x128xi8> to vector<128x128xi32>
    %c0_i32 = arith.constant 0 : i32
    %2 = vector.broadcast %c0_i32 : i32 to vector<128x128xi32>
    %3 = arith.cmpi ne, %1, %2 : vector<128x128xi32>
    %c0_1 = arith.constant 0 : index
    %c0_2 = arith.constant 0 : index
    %4 = vector.load %arg0[%c0_1, %c0_2] : memref<128x128xbf16, #tpu.memory_space<vmem>>, vector<128x128xbf16>
    %c0_3 = arith.constant 0 : index
    %c0_4 = arith.constant 0 : index
    %5 = vector.load %arg2[%c0_3, %c0_4] : memref<128x128xbf16, #tpu.memory_space<vmem>>, vector<128x128xbf16>
    %cst = arith.constant dense<0.000000e+00> : vector<128x128xf32>
    %6 = tpu.matmul %4, %5, %cst {dimension_numbers = #tpu.dot_dimension_numbers<[1], [0], [0], [1], [0, 0, 1, 1], [], []>} : vector<128x128xbf16>, vector<128x128xbf16>, vector<128x128xf32> -> vector<128x128xf32>
    %7 = vector.extract_strided_slice %6 {offsets = [0, 32], sizes = [128, 1], strides = [1, 1]} : vector<128x128xf32> to vector<128x1xf32>
    %c0_5 = arith.constant 0 : index
    %c0_6 = arith.constant 0 : index
    %8 = vector.load %arg3[%c0_5, %c0_6] : memref<1x128xbf16, #tpu.memory_space<vmem>>, vector<1x128xbf16>
    %cst_7 = arith.constant dense<0.000000e+00> : vector<1x128xf32>
    %9 = tpu.matmul %8, %4, %cst_7 {dimension_numbers = #tpu.dot_dimension_numbers<[1], [1], [0], [0], [0, 0, 1, 0], [], []>} : vector<1x128xbf16>, vector<128x128xbf16>, vector<1x128xf32> -> vector<1x128xf32>
    %10 = vector.broadcast %7 : vector<128x1xf32> to vector<128x128xf32>
    %11 = vector.broadcast %9 : vector<1x128xf32> to vector<128x128xf32>
    %12 = arith.addf %10, %11 : vector<128x128xf32>
    %cst_8 = arith.constant 0.000000e+00 : f32
    %13 = vector.broadcast %cst_8 : f32 to vector<128x128xf32>
    %14 = arith.cmpf oge, %12, %13 : vector<128x128xf32>
    %cst_9 = arith.constant 2.000000e-01 : f32
    %15 = vector.broadcast %cst_9 : f32 to vector<128x128xf32>
    %16 = arith.mulf %15, %12 : vector<128x128xf32>
    %17 = arith.select %14, %12, %16 : vector<128x128xi1>, vector<128x128xf32>
    %cst_10 = arith.constant -1.000000e+30 : f32
    %18 = vector.broadcast %cst_10 : f32 to vector<128x128xf32>
    %19 = arith.select %3, %17, %18 : vector<128x128xi1>, vector<128x128xf32>
    %cst_11 = arith.constant dense<0xFF800000> : vector<128xf32>
    %20 = vector.multi_reduction <maximumf>, %19, %cst_11 [1] : vector<128x128xf32> to vector<128xf32>
    %21 = vector.shape_cast %20 : vector<128xf32> to vector<128x1xf32>
    %22 = vector.broadcast %21 : vector<128x1xf32> to vector<128x128xf32>
    %23 = arith.subf %19, %22 : vector<128x128xf32>
    %24 = math.exp %23 : vector<128x128xf32>
    %cst_12 = arith.constant dense<0.000000e+00> : vector<128xf32>
    %25 = vector.multi_reduction <add>, %24, %cst_12 [1] : vector<128x128xf32> to vector<128xf32>
    %26 = vector.shape_cast %25 : vector<128xf32> to vector<128x1xf32>
    %27 = tpu.reciprocal %26 {approx = true} : vector<128x1xf32> -> vector<128x1xf32>
    %28 = vector.broadcast %27 : vector<128x1xf32> to vector<128x128xf32>
    %29 = arith.mulf %24, %28 : vector<128x128xf32>
    %30 = arith.truncf %29 : vector<128x128xf32> to vector<128x128xbf16>
    %31 = arith.truncf %6 : vector<128x128xf32> to vector<128x128xbf16>
    %cst_13 = arith.constant dense<0.000000e+00> : vector<128x128xf32>
    %32 = tpu.matmul %30, %31, %cst_13 {dimension_numbers = #tpu.dot_dimension_numbers<[1], [0], [0], [1], [0, 0, 1, 1], [], []>} : vector<128x128xbf16>, vector<128x128xbf16>, vector<128x128xf32> -> vector<128x128xf32>
    %c0_14 = arith.constant 0 : index
    %c0_15 = arith.constant 0 : index
    %33 = vector.load %arg4[%c0_14, %c0_15] : memref<1x128xf32, #tpu.memory_space<vmem>>, vector<1x128xf32>
    %34 = vector.broadcast %33 : vector<1x128xf32> to vector<128x128xf32>
    %35 = arith.addf %32, %34 : vector<128x128xf32>
    %cst_16 = arith.constant 0.000000e+00 : f32
    %36 = vector.broadcast %cst_16 : f32 to vector<128x128xf32>
    %37 = arith.maximumf %35, %36 : vector<128x128xf32>
    %38 = arith.truncf %37 : vector<128x128xf32> to vector<128x128xbf16>
    %c0_17 = arith.constant 0 : index
    %c0_18 = arith.constant 0 : index
    %39 = vector.load %arg5[%c0_17, %c0_18] : memref<128x128xbf16, #tpu.memory_space<vmem>>, vector<128x128xbf16>
    %cst_19 = arith.constant dense<0.000000e+00> : vector<128x128xf32>
    %40 = tpu.matmul %38, %39, %cst_19 {dimension_numbers = #tpu.dot_dimension_numbers<[1], [0], [0], [1], [0, 0, 1, 1], [], []>} : vector<128x128xbf16>, vector<128x128xbf16>, vector<128x128xf32> -> vector<128x128xf32>
    %41 = vector.extract_strided_slice %40 {offsets = [0, 32], sizes = [128, 1], strides = [1, 1]} : vector<128x128xf32> to vector<128x1xf32>
    %c0_20 = arith.constant 0 : index
    %c0_21 = arith.constant 0 : index
    %42 = vector.load %arg6[%c0_20, %c0_21] : memref<1x128xbf16, #tpu.memory_space<vmem>>, vector<1x128xbf16>
    %cst_22 = arith.constant dense<0.000000e+00> : vector<1x128xf32>
    %43 = tpu.matmul %42, %38, %cst_22 {dimension_numbers = #tpu.dot_dimension_numbers<[1], [1], [0], [0], [0, 0, 1, 0], [], []>} : vector<1x128xbf16>, vector<128x128xbf16>, vector<1x128xf32> -> vector<1x128xf32>
    %44 = vector.broadcast %41 : vector<128x1xf32> to vector<128x128xf32>
    %45 = vector.broadcast %43 : vector<1x128xf32> to vector<128x128xf32>
    %46 = arith.addf %44, %45 : vector<128x128xf32>
    %cst_23 = arith.constant 0.000000e+00 : f32
    %47 = vector.broadcast %cst_23 : f32 to vector<128x128xf32>
    %48 = arith.cmpf oge, %46, %47 : vector<128x128xf32>
    %cst_24 = arith.constant 2.000000e-01 : f32
    %49 = vector.broadcast %cst_24 : f32 to vector<128x128xf32>
    %50 = arith.mulf %49, %46 : vector<128x128xf32>
    %51 = arith.select %48, %46, %50 : vector<128x128xi1>, vector<128x128xf32>
    %cst_25 = arith.constant -1.000000e+30 : f32
    %52 = vector.broadcast %cst_25 : f32 to vector<128x128xf32>
    %53 = arith.select %3, %51, %52 : vector<128x128xi1>, vector<128x128xf32>
    %cst_26 = arith.constant dense<0xFF800000> : vector<128xf32>
    %54 = vector.multi_reduction <maximumf>, %53, %cst_26 [1] : vector<128x128xf32> to vector<128xf32>
    %55 = vector.shape_cast %54 : vector<128xf32> to vector<128x1xf32>
    %56 = vector.broadcast %55 : vector<128x1xf32> to vector<128x128xf32>
    %57 = arith.subf %53, %56 : vector<128x128xf32>
    %58 = math.exp %57 : vector<128x128xf32>
    %cst_27 = arith.constant dense<0.000000e+00> : vector<128xf32>
    %59 = vector.multi_reduction <add>, %58, %cst_27 [1] : vector<128x128xf32> to vector<128xf32>
    %60 = vector.shape_cast %59 : vector<128xf32> to vector<128x1xf32>
    %61 = tpu.reciprocal %60 {approx = true} : vector<128x1xf32> -> vector<128x1xf32>
    %62 = vector.broadcast %61 : vector<128x1xf32> to vector<128x128xf32>
    %63 = arith.mulf %58, %62 : vector<128x128xf32>
    %64 = arith.truncf %63 : vector<128x128xf32> to vector<128x128xbf16>
    %65 = arith.truncf %40 : vector<128x128xf32> to vector<128x128xbf16>
    %cst_28 = arith.constant dense<0.000000e+00> : vector<128x128xf32>
    %66 = tpu.matmul %64, %65, %cst_28 {dimension_numbers = #tpu.dot_dimension_numbers<[1], [0], [0], [1], [0, 0, 1, 1], [], []>} : vector<128x128xbf16>, vector<128x128xbf16>, vector<128x128xf32> -> vector<128x128xf32>
    %c0_29 = arith.constant 0 : index
    %c0_30 = arith.constant 0 : index
    %67 = vector.load %arg7[%c0_29, %c0_30] : memref<1x128xf32, #tpu.memory_space<vmem>>, vector<1x128xf32>
    %68 = vector.broadcast %67 : vector<1x128xf32> to vector<128x128xf32>
    %69 = arith.addf %66, %68 : vector<128x128xf32>
    %c0_31 = arith.constant 0 : index
    %c0_32 = arith.constant 0 : index
    %70 = vector.load %arg8[%c0_31, %c0_32] : memref<128x128xf32, #tpu.memory_space<vmem>>, vector<128x128xf32>
    tpu.vector_store %arg8[%c0_31, %c0_32], %69 {strides = array<i32>} : memref<128x128xf32, #tpu.memory_space<vmem>>, vector<128x128xf32>,
    return
  }
}

</mosaic_0001>

<llo_original>
// kernel: gat_forward.1
$region0: #{gat_forward.1}
  #allocation0 [shape = 'u32[]', space=smem, size = 0x4, offset = 0x4, fixed_abs, tag = 'smem constant byte address 0x4 - core index']
  #allocation1 [shape = 'u32[144,128]{1,0:T(1,128)}', space=vmem, size = 0x12000, scoped, tag = 'internal scratch']
  %s0 = inlined_call_operand.vmem [shape: bf16[128,128], index: 0, kind: input, shape index: {}]
  %s1 = inlined_call_operand.vmem [shape: s8[128,128], index: 1, kind: input, shape index: {}]
  %s2 = inlined_call_operand.vmem [shape: bf16[128,128], index: 2, kind: input, shape index: {}]
  %s3 = inlined_call_operand.vmem [shape: bf16[1,128], index: 3, kind: input, shape index: {}]
  %s4 = inlined_call_operand.vmem [shape: f32[1,128], index: 4, kind: input, shape index: {}]
  %s5 = inlined_call_operand.vmem [shape: bf16[128,128], index: 5, kind: input, shape index: {}]
  %s6 = inlined_call_operand.vmem [shape: bf16[1,128], index: 6, kind: input, shape index: {}]
  %s7 = inlined_call_operand.vmem [shape: f32[1,128], index: 7, kind: input, shape index: {}]
  %s8 = inlined_call_operand.vmem [shape: f32[128,128], index: 8, kind: output, shape index: {}]
  %s9 = sld [smem:[#allocation0]]
  $region42: #{gat_forward.1} parent=0
    _
  %s11 = ssub.s32 1, %s9
  %s12 = scalar_select 0, %s11, %s9
  // Predicated region
  $region2: #{gat_forward.1} parent=0 // pred_check
    _
  $region3: #{gat_forward.1} parent=0 // pred_check_branch
    %14 = sbr.rel (0) target = $region5
  $region4: #{gat_forward.1} parent=0 // pred_region
    _
  $region5: #{gat_forward.1} parent=0 // pred_fallthru
    _
  // Predicated region
  $region6: #{gat_forward.1} parent=0 // pred_check
    _
  $region7: #{gat_forward.1} parent=0 // pred_check_branch
    %16 = sbr.rel (0) target = $region9
  $region8: #{gat_forward.1} parent=0 // pred_region
    _
  $region9: #{gat_forward.1} parent=0 // pred_fallthru
    _
  // Predicated region
  $region10: #{gat_forward.1} parent=0 // pred_check
    _
  $region11: #{gat_forward.1} parent=0 // pred_check_branch
    %18 = sbr.rel (0) target = $region13
  $region12: #{gat_forward.1} parent=0 // pred_region
    _
  $region13: #{gat_forward.1} parent=0 // pred_fallthru
    _
  // Predicated region
  $region14: #{gat_forward.1} parent=0 // pred_check
    _
  $region15: #{gat_forward.1} parent=0 // pred_check_branch
    %20 = sbr.rel (0) target = $region17
  $region16: #{gat_forward.1} parent=0 // pred_region
    _
  $region17: #{gat_forward.1} parent=0 // pred_fallthru
    _
  // Predicated region
  $region18: #{gat_forward.1} parent=0 // pred_check
    _
  $region19: #{gat_forward.1} parent=0 // pred_check_branch
    %22 = sbr.rel (0) target = $region21
  $region20: #{gat_forward.1} parent=0 // pred_region
    _
  $region21: #{gat_forward.1} parent=0 // pred_fallthru
    _
  // Predicated region
  $region22: #{gat_forward.1} parent=0 // pred_check
    _
  $region23: #{gat_forward.1} parent=0 // pred_check_branch
    %24 = sbr.rel (0) target = $region25
  $region24: #{gat_forward.1} parent=0 // pred_region
    _
  $region25: #{gat_forward.1} parent=0 // pred_fallthru
    _
  // Predicated region
  $region26: #{gat_forward.1} parent=0 // pred_check
    _
  $region27: #{gat_forward.1} parent=0 // pred_check_branch
    %26 = sbr.rel (0) target = $region29
  $region28: #{gat_forward.1} parent=0 // pred_region
    _
  $region29: #{gat_forward.1} parent=0 // pred_fallthru
    _
  // Predicated region
  $region30: #{gat_forward.1} parent=0 // pred_check
    _
  $region31: #{gat_forward.1} parent=0 // pred_check_branch
    %28 = sbr.rel (0) target = $region33
  $region32: #{gat_forward.1} parent=0 // pred_region
    _
  $region33: #{gat_forward.1} parent=0 // pred_fallthru
    _
  %v30 = vld [vmem:[%s1] sm:$0xff]
  %v31 = vld [vmem:[%s1 + $0x8] sm:$0xff]
  %v32 = vld [vmem:[%s1 + $0x10] sm:$0xff]
  %v33 = vld [vmem:[%s1 + $0x18] sm:$0xff]
  %v34 = vunpack.c.0.s8 %v30
  %v35 = vunpack.c.1.s8 %v30
  %v36 = vunpack.c.2.s8 %v30
  %v37 = vunpack.c.3.s8 %v30
  %v38 = vunpack.c.0.s8 %v31
  %v39 = vunpack.c.1.s8 %v31
  %v40 = vunpack.c.2.s8 %v31
  %v41 = vunpack.c.3.s8 %v31
  %v42 = vunpack.c.0.s8 %v32
  %v43 = vunpack.c.1.s8 %v32
  %v44 = vunpack.c.2.s8 %v32
  %v45 = vunpack.c.3.s8 %v32
  %v46 = vunpack.c.0.s8 %v33
  %v47 = vunpack.c.1.s8 %v33
  %v48 = vunpack.c.2.s8 %v33
  %v49 = vunpack.c.3.s8 %v33
  %vm50 = vcmp.ne.s32.totalorder %v34, 0
  %vm51 = vcmp.ne.s32.totalorder %v35, 0
  %vm52 = vcmp.ne.s32.totalorder %v36, 0
  %vm53 = vcmp.ne.s32.totalorder %v37, 0
  %vm54 = vcmp.ne.s32.totalorder %v38, 0
  %vm55 = vcmp.ne.s32.totalorder %v39, 0
  %vm56 = vcmp.ne.s32.totalorder %v40, 0
  %vm57 = vcmp.ne.s32.totalorder %v41, 0
  %vm58 = vcmp.ne.s32.totalorder %v42, 0
  %vm59 = vcmp.ne.s32.totalorder %v43, 0
  %vm60 = vcmp.ne.s32.totalorder %v44, 0
  %vm61 = vcmp.ne.s32.totalorder %v45, 0
  %vm62 = vcmp.ne.s32.totalorder %v46, 0
  %vm63 = vcmp.ne.s32.totalorder %v47, 0
  %vm64 = vcmp.ne.s32.totalorder %v48, 0
  %vm65 = vcmp.ne.s32.totalorder %v49, 0
  %v66 = vld [vmem:[%s0] sm:$0xf]
  %v67 = vld [vmem:[%s0 + $0x4] sm:$0xf]
  %v68 = vld [vmem:[%s0 + $0x8] sm:$0xf]
  %v69 = vld [vmem:[%s0 + $0xc] sm:$0xf]
  %v70 = vld [vmem:[%s0 + $0x10] sm:$0xf]
  %v71 = vld [vmem:[%s0 + $0x14] sm:$0xf]
  %v72 = vld [vmem:[%s0 + $0x18] sm:$0xf]
  %v73 = vld [vmem:[%s0 + $0x1c] sm:$0xf]
  %v74 = vld [vmem:[%s0 + $0x20] sm:$0xf]
  %v75 = vld [vmem:[%s0 + $0x24] sm:$0xf]
  %v76 = vld [vmem:[%s0 + $0x28] sm:$0xf]
  %v77 = vld [vmem:[%s0 + $0x2c] sm:$0xf]
  %v78 = vld [vmem:[%s0 + $0x30] sm:$0xf]
  %v79 = vld [vmem:[%s0 + $0x34] sm:$0xf]
  %v80 = vld [vmem:[%s0 + $0x38] sm:$0xf]
  %v81 = vld [vmem:[%s0 + $0x3c] sm:$0xf]
  %v82 = vld [vmem:[%s2] sm:$0xf]
  %v83 = vld [vmem:[%s2 + $0x4] sm:$0xf]
  %v84 = vld [vmem:[%s2 + $0x8] sm:$0xf]
  %v85 = vld [vmem:[%s2 + $0xc] sm:$0xf]
  %v86 = vld [vmem:[%s2 + $0x10] sm:$0xf]
  %v87 = vld [vmem:[%s2 + $0x14] sm:$0xf]
  %v88 = vld [vmem:[%s2 + $0x18] sm:$0xf]
  %v89 = vld [vmem:[%s2 + $0x1c] sm:$0xf]
  %v90 = vld [vmem:[%s2 + $0x20] sm:$0xf]
  %v91 = vld [vmem:[%s2 + $0x24] sm:$0xf]
  %v92 = vld [vmem:[%s2 + $0x28] sm:$0xf]
  %v93 = vld [vmem:[%s2 + $0x2c] sm:$0xf]
  %v94 = vld [vmem:[%s2 + $0x30] sm:$0xf]
  %v95 = vld [vmem:[%s2 + $0x34] sm:$0xf]
  %v96 = vld [vmem:[%s2 + $0x38] sm:$0xf]
  %v97 = vld [vmem:[%s2 + $0x3c] sm:$0xf]
  %v114 = vunpack.c.l.b16 %v66
  %v115 = vunpack.c.l.b16 %v67
  %v116 = vunpack.c.l.b16 %v68
  %v117 = vunpack.c.l.b16 %v69
  %v118 = vunpack.c.l.b16 %v70
  %v119 = vunpack.c.l.b16 %v71
  %v120 = vunpack.c.l.b16 %v72
  %v121 = vunpack.c.l.b16 %v73
  %v122 = vunpack.c.l.b16 %v74
  %v123 = vunpack.c.l.b16 %v75
  %v124 = vunpack.c.l.b16 %v76
  %v125 = vunpack.c.l.b16 %v77
  %v126 = vunpack.c.l.b16 %v78
  %v127 = vunpack.c.l.b16 %v79
  %v128 = vunpack.c.l.b16 %v80
  %v129 = vunpack.c.l.b16 %v81
  %v130 = vpack.c.b16 %v115, %v114
  %v131 = vpack.c.b16 %v117, %v116
  %v132 = vpack.c.b16 %v119, %v118
  %v133 = vpack.c.b16 %v121, %v120
  %v134 = vpack.c.b16 %v123, %v122
  %v135 = vpack.c.b16 %v125, %v124
  %v136 = vpack.c.b16 %v127, %v126
  %v137 = vpack.c.b16 %v129, %v128
  %v162 = vunpack.c.l.b16 %v82
  %v163 = vunpack.c.l.b16 %v83
  %v164 = vunpack.c.l.b16 %v84
  %v165 = vunpack.c.l.b16 %v85
  %v166 = vunpack.c.l.b16 %v86
  %v167 = vunpack.c.l.b16 %v87
  %v168 = vunpack.c.l.b16 %v88
  %v169 = vunpack.c.l.b16 %v89
  %v170 = vunpack.c.l.b16 %v90
  %v171 = vunpack.c.l.b16 %v91
  %v172 = vunpack.c.l.b16 %v92
  %v173 = vunpack.c.l.b16 %v93
  %v174 = vunpack.c.l.b16 %v94
  %v175 = vunpack.c.l.b16 %v95
  %v176 = vunpack.c.l.b16 %v96
  %v177 = vunpack.c.l.b16 %v97
  %v178 = vpack.c.b16 %v163, %v162
  %v179 = vpack.c.b16 %v165, %v164
  %v180 = vpack.c.b16 %v167, %v166
  %v181 = vpack.c.b16 %v169, %v168
  %v182 = vpack.c.b16 %v171, %v170
  %v183 = vpack.c.b16 %v173, %v172
  %v184 = vpack.c.b16 %v175, %v174
  %v185 = vpack.c.b16 %v177, %v176
  %194 = vmatprep.subr.bf16.mxu0 0
  %195 = vmatpush1.bf16.msra.mxu0 %v185
  %196 = vmatprep.subr.bf16.mxu0 0
  %197 = vmatpush1.bf16.msra.mxu0 %v184
  %198 = vmatprep.subr.bf16.mxu0 0
  %199 = vmatpush1.bf16.msra.mxu0 %v183
  %200 = vmatprep.subr.bf16.mxu0 0
  %201 = vmatpush1.bf16.msra.mxu0 %v182
  %202 = vmatprep.subr.bf16.mxu0 0
  %203 = vmatpush1.bf16.msra.mxu0 %v181
  %204 = vmatprep.subr.bf16.mxu0 0
  %205 = vmatpush1.bf16.msra.mxu0 %v180
  %206 = vmatprep.subr.bf16.mxu0 0
  %207 = vmatpush1.bf16.msra.mxu0 %v179
  %208 = vmatprep.subr.bf16.mxu0 0
  %209 = vmatpush1.bf16.msra.mxu0 %v178
  %210 = vmatprep.subr.bf16.mxu0 0
  %211 = vmatpush2.bf16.msra.mxu0 0
  %212 = vmatprep.subr.bf16.mxu0 0
  %213 = vmatpush2.bf16.msra.mxu0 0
  %214 = vmatprep.subr.bf16.mxu0 0
  %215 = vmatpush2.bf16.msra.mxu0 0
  %216 = vmatprep.subr.bf16.mxu0 0
  %217 = vmatpush2.bf16.msra.mxu0 0
  %218 = vmatprep.subr.bf16.mxu0 0
  %219 = vmatpush2.bf16.msra.mxu0 0
  %220 = vmatprep.subr.bf16.mxu0 0
  %221 = vmatpush2.bf16.msra.mxu0 0
  %222 = vmatprep.subr.bf16.mxu0 0
  %223 = vmatpush2.bf16.msra.mxu0 0
  %224 = vmatprep.subr.bf16.mxu0 0
  %225 = vmatpush2.bf16.msra.mxu0 0
  %226 = vmatprep.mubr.bf16.mxu0 0
  %227 = vmatmul.mubr.bf16.gmra.mxu0 %v130
  %v228 = vpop.f32.mrf.mxu0
  %v229 = vadd.f32 0.0, %v228
  %v230 = vpop.f32.mrf.mxu0
  %v231 = vpop.f32.mrf.mxu0
  %v232 = vadd.f32 0.0, %v231
  %v233 = vpop.f32.mrf.mxu0
  %234 = vmatprep.mubr.bf16.mxu0 0
  %235 = vmatmul.mubr.bf16.gmra.mxu0 %v131
  %v236 = vpop.f32.mrf.mxu0
  %v237 = vadd.f32 0.0, %v236
  %v238 = vpop.f32.mrf.mxu0
  %v239 = vpop.f32.mrf.mxu0
  %v240 = vadd.f32 0.0, %v239
  %v241 = vpop.f32.mrf.mxu0
  %242 = vmatprep.mubr.bf16.mxu0 0
  %243 = vmatmul.mubr.bf16.gmra.mxu0 %v132
  %v244 = vpop.f32.mrf.mxu0
  %v245 = vadd.f32 0.0, %v244
  %v246 = vpop.f32.mrf.mxu0
  %v247 = vpop.f32.mrf.mxu0
  %v248 = vadd.f32 0.0, %v247
  %v249 = vpop.f32.mrf.mxu0
  %250 = vmatprep.mubr.bf16.mxu0 0
  %251 = vmatmul.mubr.bf16.gmra.mxu0 %v133
  %v252 = vpop.f32.mrf.mxu0
  %v253 = vadd.f32 0.0, %v252
  %v254 = vpop.f32.mrf.mxu0
  %v255 = vpop.f32.mrf.mxu0
  %v256 = vadd.f32 0.0, %v255
  %v257 = vpop.f32.mrf.mxu0
  %258 = vmatprep.mubr.bf16.mxu0 0
  %259 = vmatmul.mubr.bf16.gmra.mxu0 %v134
  %v260 = vpop.f32.mrf.mxu0
  %v261 = vadd.f32 0.0, %v260
  %v262 = vpop.f32.mrf.mxu0
  %v263 = vpop.f32.mrf.mxu0
  %v264 = vadd.f32 0.0, %v263
  %v265 = vpop.f32.mrf.mxu0
  %266 = vmatprep.mubr.bf16.mxu0 0
  %267 = vmatmul.mubr.bf16.gmra.mxu0 %v135
  %v268 = vpop.f32.mrf.mxu0
  %v269 = vadd.f32 0.0, %v268
  %v270 = vpop.f32.mrf.mxu0
  %v271 = vpop.f32.mrf.mxu0
  %v272 = vadd.f32 0.0, %v271
  %v273 = vpop.f32.mrf.mxu0
  %274 = vmatprep.mubr.bf16.mxu0 0
  %275 = vmatmul.mubr.bf16.gmra.mxu0 %v136
  %v276 = vpop.f32.mrf.mxu0
  %v277 = vadd.f32 0.0, %v276
  %v278 = vpop.f32.mrf.mxu0
  %v279 = vpop.f32.mrf.mxu0
  %v280 = vadd.f32 0.0, %v279
  %v281 = vpop.f32.mrf.mxu0
  %282 = vmatprep.mubr.bf16.mxu0 0
  %283 = vmatmul.mubr.bf16.gmra.mxu0 %v137
  %v284 = vpop.f32.mrf.mxu0
  %v285 = vadd.f32 0.0, %v284
  %v286 = vpop.f32.mrf.mxu0
  %v287 = vpop.f32.mrf.mxu0
  %v288 = vadd.f32 0.0, %v287
  %v289 = vpop.f32.mrf.mxu0
  %290 = vdwg.mxu0
  %v291 = vld [vmem:[%s3] sm:$0x1]
  %292 = vmatprep.subr.bf16.mxu0 0
  %293 = vmatpush1.bf16.xpose.msra.mxu0 %v137
  %294 = vmatprep.subr.bf16.mxu0 0
  %295 = vmatpush1.bf16.xpose.msra.mxu0 %v136
  %296 = vmatprep.subr.bf16.mxu0 0
  %297 = vmatpush1.bf16.xpose.msra.mxu0 %v135
  %298 = vmatprep.subr.bf16.mxu0 0
  %299 = vmatpush1.bf16.xpose.msra.mxu0 %v134
  %300 = vmatprep.subr.bf16.mxu0 0
  %301 = vmatpush1.bf16.xpose.msra.mxu0 %v133
  %302 = vmatprep.subr.bf16.mxu0 0
  %303 = vmatpush1.bf16.xpose.msra.mxu0 %v132
  %304 = vmatprep.subr.bf16.mxu0 0
  %305 = vmatpush1.bf16.xpose.msra.mxu0 %v131
  %306 = vmatprep.subr.bf16.mxu0 0
  %307 = vmatpush1.bf16.xpose.msra.mxu0 %v130
  %308 = vmatprep.subr.bf16.mxu0 0
  %309 = vmatpush2.bf16.xpose.msra.mxu0 0
  %310 = vmatprep.subr.bf16.mxu0 0
  %311 = vmatpush2.bf16.xpose.msra.mxu0 0
  %312 = vmatprep.subr.bf16.mxu0 0
  %313 = vmatpush2.bf16.xpose.msra.mxu0 0
  %314 = vmatprep.subr.bf16.mxu0 0
  %315 = vmatpush2.bf16.xpose.msra.mxu0 0
  %316 = vmatprep.subr.bf16.mxu0 0
  %317 = vmatpush2.bf16.xpose.msra.mxu0 0
  %318 = vmatprep.subr.bf16.mxu0 0
  %319 = vmatpush2.bf16.xpose.msra.mxu0 0
  %320 = vmatprep.subr.bf16.mxu0 0
  %321 = vmatpush2.bf16.xpose.msra.mxu0 0
  %322 = vmatprep.subr.bf16.mxu0 0
  %323 = vmatpush2.bf16.xpose.msra.mxu0 0
  %324 = vmatprep.mubr.bf16.mxu0 0
  %325 = vmatmul.mubr.bf16.gmra.mxu0 %v291
  %v326 = vpop.f32.mrf.mxu0
  %v327 = vadd.f32 0.0, %v326
  %v328 = vpop.f32.mrf.mxu0
  %v329 = vpop.f32.mrf.mxu0
  %v330 = vpop.f32.mrf.mxu0
  %331 = vdwg.mxu0
  %333 = vset.pattern.permute.xlu0 32
  %334 = vperm.xlu0 %333, %v229
  %v335 = vpop.permute.xlu0 %334
  %338 = vset.pattern.permute.xlu0 32
  %339 = vperm.xlu0 %338, %v232
  %v340 = vpop.permute.xlu0 %339
  %343 = vset.pattern.permute.xlu0 32
  %344 = vperm.xlu0 %343, %v237
  %v345 = vpop.permute.xlu0 %344
  %348 = vset.pattern.permute.xlu0 32
  %349 = vperm.xlu0 %348, %v240
  %v350 = vpop.permute.xlu0 %349
  %353 = vset.pattern.permute.xlu0 32
  %354 = vperm.xlu0 %353, %v245
  %v355 = vpop.permute.xlu0 %354
  %358 = vset.pattern.permute.xlu0 32
  %359 = vperm.xlu0 %358, %v248
  %v360 = vpop.permute.xlu0 %359
  %363 = vset.pattern.permute.xlu0 32
  %364 = vperm.xlu0 %363, %v253
  %v365 = vpop.permute.xlu0 %364
  %368 = vset.pattern.permute.xlu0 32
  %369 = vperm.xlu0 %368, %v256
  %v370 = vpop.permute.xlu0 %369
  %373 = vset.pattern.permute.xlu0 32
  %374 = vperm.xlu0 %373, %v261
  %v375 = vpop.permute.xlu0 %374
  %378 = vset.pattern.permute.xlu0 32
  %379 = vperm.xlu0 %378, %v264
  %v380 = vpop.permute.xlu0 %379
  %383 = vset.pattern.permute.xlu0 32
  %384 = vperm.xlu0 %383, %v269
  %v385 = vpop.permute.xlu0 %384
  %388 = vset.pattern.permute.xlu0 32
  %389 = vperm.xlu0 %388, %v272
  %v390 = vpop.permute.xlu0 %389
  %393 = vset.pattern.permute.xlu0 32
  %394 = vperm.xlu0 %393, %v277
  %v395 = vpop.permute.xlu0 %394
  %398 = vset.pattern.permute.xlu0 32
  %399 = vperm.xlu0 %398, %v280
  %v400 = vpop.permute.xlu0 %399
  %403 = vset.pattern.permute.xlu0 32
  %404 = vperm.xlu0 %403, %v285
  %v405 = vpop.permute.xlu0 %404
  %408 = vset.pattern.permute.xlu0 32
  %409 = vperm.xlu0 %408, %v288
  %v410 = vpop.permute.xlu0 %409
  %v412 = vlaneseq
  %v413 = vshrl.u32 %v412, 7
  %v414 = vsub.s32 0, %v413
  %v415 = vrot.slane %v327, %v414
  %v416 = vadd.f32 %v335, %v415
  %v417 = vadd.f32 %v340, %v415
  %v418 = vadd.f32 %v345, %v415
  %v419 = vadd.f32 %v350, %v415
  %v420 = vadd.f32 %v355, %v415
  %v421 = vadd.f32 %v360, %v415
  %v422 = vadd.f32 %v365, %v415
  %v423 = vadd.f32 %v370, %v415
  %v424 = vadd.f32 %v375, %v415
  %v425 = vadd.f32 %v380, %v415
  %v426 = vadd.f32 %v385, %v415
  %v427 = vadd.f32 %v390, %v415
  %v428 = vadd.f32 %v395, %v415
  %v429 = vadd.f32 %v400, %v415
  %v430 = vadd.f32 %v405, %v415
  %v431 = vadd.f32 %v410, %v415
  %vm432 = vcmp.ge.f32.partialorder %v416, 0.0
  %vm433 = vcmp.ge.f32.partialorder %v417, 0.0
  %vm434 = vcmp.ge.f32.partialorder %v418, 0.0
  %vm435 = vcmp.ge.f32.partialorder %v419, 0.0
  %vm436 = vcmp.ge.f32.partialorder %v420, 0.0
  %vm437 = vcmp.ge.f32.partialorder %v421, 0.0
  %vm438 = vcmp.ge.f32.partialorder %v422, 0.0
  %vm439 = vcmp.ge.f32.partialorder %v423, 0.0
  %vm440 = vcmp.ge.f32.partialorder %v424, 0.0
  %vm441 = vcmp.ge.f32.partialorder %v425, 0.0
  %vm442 = vcmp.ge.f32.partialorder %v426, 0.0
  %vm443 = vcmp.ge.f32.partialorder %v427, 0.0
  %vm444 = vcmp.ge.f32.partialorder %v428, 0.0
  %vm445 = vcmp.ge.f32.partialorder %v429, 0.0
  %vm446 = vcmp.ge.f32.partialorder %v430, 0.0
  %vm447 = vcmp.ge.f32.partialorder %v431, 0.0
  %v448 = vmul.f32 %v416, 0.2
  %v449 = vmul.f32 %v417, 0.2
  %v450 = vmul.f32 %v418, 0.2
  %v451 = vmul.f32 %v419, 0.2
  %v452 = vmul.f32 %v420, 0.2
  %v453 = vmul.f32 %v421, 0.2
  %v454 = vmul.f32 %v422, 0.2
  %v455 = vmul.f32 %v423, 0.2
  %v456 = vmul.f32 %v424, 0.2
  %v457 = vmul.f32 %v425, 0.2
  %v458 = vmul.f32 %v426, 0.2
  %v459 = vmul.f32 %v427, 0.2
  %v460 = vmul.f32 %v428, 0.2
  %v461 = vmul.f32 %v429, 0.2
  %v462 = vmul.f32 %v430, 0.2
  %v463 = vmul.f32 %v431, 0.2
  %v464 = vsel %vm432, %v416, %v448
  %v465 = vsel %vm433, %v417, %v449
  %v466 = vsel %vm434, %v418, %v450
  %v467 = vsel %vm435, %v419, %v451
  %v468 = vsel %vm436, %v420, %v452
  %v469 = vsel %vm437, %v421, %v453
  %v470 = vsel %vm438, %v422, %v454
  %v471 = vsel %vm439, %v423, %v455
  %v472 = vsel %vm440, %v424, %v456
  %v473 = vsel %vm441, %v425, %v457
  %v474 = vsel %vm442, %v426, %v458
  %v475 = vsel %vm443, %v427, %v459
  %v476 = vsel %vm444, %v428, %v460
  %v477 = vsel %vm445, %v429, %v461
  %v478 = vsel %vm446, %v430, %v462
  %v479 = vsel %vm447, %v431, %v463
  %v480 = vsel %vm50, %v464, -1e+30
  %v481 = vsel %vm51, %v465, -1e+30
  %v482 = vsel %vm52, %v466, -1e+30
  %v483 = vsel %vm53, %v467, -1e+30
  %v484 = vsel %vm54, %v468, -1e+30
  %v485 = vsel %vm55, %v469, -1e+30
  %v486 = vsel %vm56, %v470, -1e+30
  %v487 = vsel %vm57, %v471, -1e+30
  %v488 = vsel %vm58, %v472, -1e+30
  %v489 = vsel %vm59, %v473, -1e+30
  %v490 = vsel %vm60, %v474, -1e+30
  %v491 = vsel %vm61, %v475, -1e+30
  %v492 = vsel %vm62, %v476, -1e+30
  %v493 = vsel %vm63, %v477, -1e+30
  %v494 = vsel %vm64, %v478, -1e+30
  %v495 = vsel %vm65, %v479, -1e+30
  %496 = vmax.xlane.f32.xlu0 %v480
  %v497 = vpop.xlane.xlu0 %496
  %498 = vmax.xlane.f32.xlu0 %v481
  %v499 = vpop.xlane.xlu0 %498
  %500 = vmax.xlane.f32.xlu0 %v482
  %v501 = vpop.xlane.xlu0 %500
  %502 = vmax.xlane.f32.xlu0 %v483
  %v503 = vpop.xlane.xlu0 %502
  %504 = vmax.xlane.f32.xlu0 %v484
  %v505 = vpop.xlane.xlu0 %504
  %506 = vmax.xlane.f32.xlu0 %v485
  %v507 = vpop.xlane.xlu0 %506
  %508 = vmax.xlane.f32.xlu0 %v486
  %v509 = vpop.xlane.xlu0 %508
  %510 = vmax.xlane.f32.xlu0 %v487
  %v511 = vpop.xlane.xlu0 %510
  %512 = vmax.xlane.f32.xlu0 %v488
  %v513 = vpop.xlane.xlu0 %512
  %514 = vmax.xlane.f32.xlu0 %v489
  %v515 = vpop.xlane.xlu0 %514
  %516 = vmax.xlane.f32.xlu0 %v490
  %v517 = vpop.xlane.xlu0 %516
  %518 = vmax.xlane.f32.xlu0 %v491
  %v519 = vpop.xlane.xlu0 %518
  %520 = vmax.xlane.f32.xlu0 %v492
  %v521 = vpop.xlane.xlu0 %520
  %522 = vmax.xlane.f32.xlu0 %v493
  %v523 = vpop.xlane.xlu0 %522
  %524 = vmax.xlane.f32.xlu0 %v494
  %v525 = vpop.xlane.xlu0 %524
  %526 = vmax.xlane.f32.xlu0 %v495
  %v527 = vpop.xlane.xlu0 %526
  %v528 = vsub.f32 %v480, %v497
  %v529 = vsub.f32 %v481, %v499
  %v530 = vsub.f32 %v482, %v501
  %v531 = vsub.f32 %v483, %v503
  %v532 = vsub.f32 %v484, %v505
  %v533 = vsub.f32 %v485, %v507
  %v534 = vsub.f32 %v486, %v509
  %v535 = vsub.f32 %v487, %v511
  %v536 = vsub.f32 %v488, %v513
  %v537 = vsub.f32 %v489, %v515
  %v538 = vsub.f32 %v490, %v517
  %v539 = vsub.f32 %v491, %v519
  %v540 = vsub.f32 %v492, %v521
  %v541 = vsub.f32 %v493, %v523
  %v542 = vsub.f32 %v494, %v525
  %v543 = vsub.f32 %v495, %v527
  %v544 = vmul.f32 %v528, 1.442695
  %v545 = vpow.pop %v544
  %v546 = vmul.f32 %v529, 1.442695
  %v547 = vpow.pop %v546
  %v548 = vmul.f32 %v530, 1.442695
  %v549 = vpow.pop %v548
  %v550 = vmul.f32 %v531, 1.442695
  %v551 = vpow.pop %v550
  %v552 = vmul.f32 %v532, 1.442695
  %v553 = vpow.pop %v552
  %v554 = vmul.f32 %v533, 1.442695
  %v555 = vpow.pop %v554
  %v556 = vmul.f32 %v534, 1.442695
  %v557 = vpow.pop %v556
  %v558 = vmul.f32 %v535, 1.442695
  %v559 = vpow.pop %v558
  %v560 = vmul.f32 %v536, 1.442695
  %v561 = vpow.pop %v560
  %v562 = vmul.f32 %v537, 1.442695
  %v563 = vpow.pop %v562
  %v564 = vmul.f32 %v538, 1.442695
  %v565 = vpow.pop %v564
  %v566 = vmul.f32 %v539, 1.442695
  %v567 = vpow.pop %v566
  %v568 = vmul.f32 %v540, 1.442695
  %v569 = vpow.pop %v568
  %v570 = vmul.f32 %v541, 1.442695
  %v571 = vpow.pop %v570
  %v572 = vmul.f32 %v542, 1.442695
  %v573 = vpow.pop %v572
  %v574 = vmul.f32 %v543, 1.442695
  %v575 = vpow.pop %v574
  %576 = vadd.xlane.f32.xlu0 %v545
  %v577 = vpop.xlane.xlu0 %576
  %578 = vadd.xlane.f32.xlu0 %v547
  %v579 = vpop.xlane.xlu0 %578
  %580 = vadd.xlane.f32.xlu0 %v549
  %v581 = vpop.xlane.xlu0 %580
  %582 = vadd.xlane.f32.xlu0 %v551
  %v583 = vpop.xlane.xlu0 %582
  %584 = vadd.xlane.f32.xlu0 %v553
  %v585 = vpop.xlane.xlu0 %584
  %586 = vadd.xlane.f32.xlu0 %v555
  %v587 = vpop.xlane.xlu0 %586
  %588 = vadd.xlane.f32.xlu0 %v557
  %v589 = vpop.xlane.xlu0 %588
  %590 = vadd.xlane.f32.xlu0 %v559
  %v591 = vpop.xlane.xlu0 %590
  %592 = vadd.xlane.f32.xlu0 %v561
  %v593 = vpop.xlane.xlu0 %592
  %594 = vadd.xlane.f32.xlu0 %v563
  %v595 = vpop.xlane.xlu0 %594
  %596 = vadd.xlane.f32.xlu0 %v565
  %v597 = vpop.xlane.xlu0 %596
  %598 = vadd.xlane.f32.xlu0 %v567
  %v599 = vpop.xlane.xlu0 %598
  %600 = vadd.xlane.f32.xlu0 %v569
  %v601 = vpop.xlane.xlu0 %600
  %602 = vadd.xlane.f32.xlu0 %v571
  %v603 = vpop.xlane.xlu0 %602
  %604 = vadd.xlane.f32.xlu0 %v573
  %v605 = vpop.xlane.xlu0 %604
  %606 = vadd.xlane.f32.xlu0 %v575
  %v607 = vpop.xlane.xlu0 %606
  %v608 = vrcp.pop %v577
  %v609 = vrcp.pop %v579
  %v610 = vrcp.pop %v581
  %v611 = vrcp.pop %v583
  %v612 = vrcp.pop %v585
  %v613 = vrcp.pop %v587
  %v614 = vrcp.pop %v589
  %v615 = vrcp.pop %v591
  %v616 = vrcp.pop %v593
  %v617 = vrcp.pop %v595
  %v618 = vrcp.pop %v597
  %v619 = vrcp.pop %v599
  %v620 = vrcp.pop %v601
  %v621 = vrcp.pop %v603
  %v622 = vrcp.pop %v605
  %v623 = vrcp.pop %v607
  %v624 = vmul.f32 %v545, %v608
  %v625 = vmul.f32 %v547, %v609
  %v626 = vmul.f32 %v549, %v610
  %v627 = vmul.f32 %v551, %v611
  %v628 = vmul.f32 %v553, %v612
  %v629 = vmul.f32 %v555, %v613
  %v630 = vmul.f32 %v557, %v614
  %v631 = vmul.f32 %v559, %v615
  %v632 = vmul.f32 %v561, %v616
  %v633 = vmul.f32 %v563, %v617
  %v634 = vmul.f32 %v565, %v618
  %v635 = vmul.f32 %v567, %v619
  %v636 = vmul.f32 %v569, %v620
  %v637 = vmul.f32 %v571, %v621
  %v638 = vmul.f32 %v573, %v622
  %v639 = vmul.f32 %v575, %v623
  %v640 = vpack.c.bf16 %v625, %v624
  %v641 = vpack.c.bf16 %v627, %v626
  %v642 = vpack.c.bf16 %v629, %v628
  %v643 = vpack.c.bf16 %v631, %v630
  %v644 = vpack.c.bf16 %v633, %v632
  %v645 = vpack.c.bf16 %v635, %v634
  %v646 = vpack.c.bf16 %v637, %v636
  %v647 = vpack.c.bf16 %v639, %v638
  %v648 = vpack.c.bf16 %v232, %v229
  %v649 = vpack.c.bf16 %v240, %v237
  %v650 = vpack.c.bf16 %v248, %v245
  %v651 = vpack.c.bf16 %v256, %v253
  %v652 = vpack.c.bf16 %v264, %v261
  %v653 = vpack.c.bf16 %v272, %v269
  %v654 = vpack.c.bf16 %v280, %v277
  %v655 = vpack.c.bf16 %v288, %v285
  %v656 = vld [vmem:[%s4] sm:$0x1]
  %v658 = vlaneseq
  %v659 = vshrl.u32 %v658, 7
  %v660 = vsub.s32 0, %v659
  %v661 = vrot.slane %v656, %v660
  %663 = vmatprep.subr.bf16.mxu0 0
  %664 = vmatpush1.bf16.msra.mxu0 %v655
  %665 = vmatprep.subr.bf16.mxu0 0
  %666 = vmatpush1.bf16.msra.mxu0 %v654
  %667 = vmatprep.subr.bf16.mxu0 0
  %668 = vmatpush1.bf16.msra.mxu0 %v653
  %669 = vmatprep.subr.bf16.mxu0 0
  %670 = vmatpush1.bf16.msra.mxu0 %v652
  %671 = vmatprep.subr.bf16.mxu0 0
  %672 = vmatpush1.bf16.msra.mxu0 %v651
  %673 = vmatprep.subr.bf16.mxu0 0
  %674 = vmatpush1.bf16.msra.mxu0 %v650
  %675 = vmatprep.subr.bf16.mxu0 0
  %676 = vmatpush1.bf16.msra.mxu0 %v649
  %677 = vmatprep.subr.bf16.mxu0 0
  %678 = vmatpush1.bf16.msra.mxu0 %v648
  %679 = vmatprep.subr.bf16.mxu0 0
  %680 = vmatpush2.bf16.msra.mxu0 0
  %681 = vmatprep.subr.bf16.mxu0 0
  %682 = vmatpush2.bf16.msra.mxu0 0
  %683 = vmatprep.subr.bf16.mxu0 0
  %684 = vmatpush2.bf16.msra.mxu0 0
  %685 = vmatprep.subr.bf16.mxu0 0
  %686 = vmatpush2.bf16.msra.mxu0 0
  %687 = vmatprep.subr.bf16.mxu0 0
  %688 = vmatpush2.bf16.msra.mxu0 0
  %689 = vmatprep.subr.bf16.mxu0 0
  %690 = vmatpush2.bf16.msra.mxu0 0
  %691 = vmatprep.subr.bf16.mxu0 0
  %692 = vmatpush2.bf16.msra.mxu0 0
  %693 = vmatprep.subr.bf16.mxu0 0
  %694 = vmatpush2.bf16.msra.mxu0 0
  %695 = vmatprep.mubr.bf16.mxu0 0
  %696 = vmatmul.mubr.bf16.gmra.mxu0 %v640
  %v697 = vpop.f32.mrf.mxu0
  %v698 = vadd.f32 %v661, %v697
  %v699 = vpop.f32.mrf.mxu0
  %v700 = vpop.f32.mrf.mxu0
  %v701 = vadd.f32 %v661, %v700
  %v702 = vpop.f32.mrf.mxu0
  %703 = vmatprep.mubr.bf16.mxu0 0
  %704 = vmatmul.mubr.bf16.gmra.mxu0 %v641
  %v705 = vpop.f32.mrf.mxu0
  %v706 = vadd.f32 %v661, %v705
  %v707 = vpop.f32.mrf.mxu0
  %v708 = vpop.f32.mrf.mxu0
  %v709 = vadd.f32 %v661, %v708
  %v710 = vpop.f32.mrf.mxu0
  %711 = vmatprep.mubr.bf16.mxu0 0
  %712 = vmatmul.mubr.bf16.gmra.mxu0 %v642
  %v713 = vpop.f32.mrf.mxu0
  %v714 = vadd.f32 %v661, %v713
  %v715 = vpop.f32.mrf.mxu0
  %v716 = vpop.f32.mrf.mxu0
  %v717 = vadd.f32 %v661, %v716
  %v718 = vpop.f32.mrf.mxu0
  %719 = vmatprep.mubr.bf16.mxu0 0
  %720 = vmatmul.mubr.bf16.gmra.mxu0 %v643
  %v721 = vpop.f32.mrf.mxu0
  %v722 = vadd.f32 %v661, %v721
  %v723 = vpop.f32.mrf.mxu0
  %v724 = vpop.f32.mrf.mxu0
  %v725 = vadd.f32 %v661, %v724
  %v726 = vpop.f32.mrf.mxu0
  %727 = vmatprep.mubr.bf16.mxu0 0
  %728 = vmatmul.mubr.bf16.gmra.mxu0 %v644
  %v729 = vpop.f32.mrf.mxu0
  %v730 = vadd.f32 %v661, %v729
  %v731 = vpop.f32.mrf.mxu0
  %v732 = vpop.f32.mrf.mxu0
  %v733 = vadd.f32 %v661, %v732
  %v734 = vpop.f32.mrf.mxu0
  %735 = vmatprep.mubr.bf16.mxu0 0
  %736 = vmatmul.mubr.bf16.gmra.mxu0 %v645
  %v737 = vpop.f32.mrf.mxu0
  %v738 = vadd.f32 %v661, %v737
  %v739 = vpop.f32.mrf.mxu0
  %v740 = vpop.f32.mrf.mxu0
  %v741 = vadd.f32 %v661, %v740
  %v742 = vpop.f32.mrf.mxu0
  %743 = vmatprep.mubr.bf16.mxu0 0
  %744 = vmatmul.mubr.bf16.gmra.mxu0 %v646
  %v745 = vpop.f32.mrf.mxu0
  %v746 = vadd.f32 %v661, %v745
  %v747 = vpop.f32.mrf.mxu0
  %v748 = vpop.f32.mrf.mxu0
  %v749 = vadd.f32 %v661, %v748
  %v750 = vpop.f32.mrf.mxu0
  %751 = vmatprep.mubr.bf16.mxu0 0
  %752 = vmatmul.mubr.bf16.gmra.mxu0 %v647
  %v753 = vpop.f32.mrf.mxu0
  %v754 = vadd.f32 %v661, %v753
  %v755 = vpop.f32.mrf.mxu0
  %v756 = vpop.f32.mrf.mxu0
  %v757 = vadd.f32 %v661, %v756
  %v758 = vpop.f32.mrf.mxu0
  %759 = vdwg.mxu0
  %v760 = vmax.f32 %v698, 0.0
  %v761 = vmax.f32 %v701, 0.0
  %v762 = vmax.f32 %v706, 0.0
  %v763 = vmax.f32 %v709, 0.0
  %v764 = vmax.f32 %v714, 0.0
  %v765 = vmax.f32 %v717, 0.0
  %v766 = vmax.f32 %v722, 0.0
  %v767 = vmax.f32 %v725, 0.0
  %v768 = vmax.f32 %v730, 0.0
  %v769 = vmax.f32 %v733, 0.0
  %v770 = vmax.f32 %v738, 0.0
  %v771 = vmax.f32 %v741, 0.0
  %v772 = vmax.f32 %v746, 0.0
  %v773 = vmax.f32 %v749, 0.0
  %v774 = vmax.f32 %v754, 0.0
  %v775 = vmax.f32 %v757, 0.0
  %v776 = vpack.c.bf16 %v761, %v760
  %v777 = vpack.c.bf16 %v763, %v762
  %v778 = vpack.c.bf16 %v765, %v764
  %v779 = vpack.c.bf16 %v767, %v766
  %v780 = vpack.c.bf16 %v769, %v768
  %v781 = vpack.c.bf16 %v771, %v770
  %v782 = vpack.c.bf16 %v773, %v772
  %v783 = vpack.c.bf16 %v775, %v774
  %v784 = vld [vmem:[%s5] sm:$0xf]
  %v785 = vld [vmem:[%s5 + $0x4] sm:$0xf]
  %v786 = vld [vmem:[%s5 + $0x8] sm:$0xf]
  %v787 = vld [vmem:[%s5 + $0xc] sm:$0xf]
  %v788 = vld [vmem:[%s5 + $0x10] sm:$0xf]
  %v789 = vld [vmem:[%s5 + $0x14] sm:$0xf]
  %v790 = vld [vmem:[%s5 + $0x18] sm:$0xf]
  %v791 = vld [vmem:[%s5 + $0x1c] sm:$0xf]
  %v792 = vld [vmem:[%s5 + $0x20] sm:$0xf]
  %v793 = vld [vmem:[%s5 + $0x24] sm:$0xf]
  %v794 = vld [vmem:[%s5 + $0x28] sm:$0xf]
  %v795 = vld [vmem:[%s5 + $0x2c] sm:$0xf]
  %v796 = vld [vmem:[%s5 + $0x30] sm:$0xf]
  %v797 = vld [vmem:[%s5 + $0x34] sm:$0xf]
  %v798 = vld [vmem:[%s5 + $0x38] sm:$0xf]
  %v799 = vld [vmem:[%s5 + $0x3c] sm:$0xf]
  %v816 = vunpack.c.l.b16 %v784
  %v817 = vunpack.c.l.b16 %v785
  %v818 = vunpack.c.l.b16 %v786
  %v819 = vunpack.c.l.b16 %v787
  %v820 = vunpack.c.l.b16 %v788
  %v821 = vunpack.c.l.b16 %v789
  %v822 = vunpack.c.l.b16 %v790
  %v823 = vunpack.c.l.b16 %v791
  %v824 = vunpack.c.l.b16 %v792
  %v825 = vunpack.c.l.b16 %v793
  %v826 = vunpack.c.l.b16 %v794
  %v827 = vunpack.c.l.b16 %v795
  %v828 = vunpack.c.l.b16 %v796
  %v829 = vunpack.c.l.b16 %v797
  %v830 = vunpack.c.l.b16 %v798
  %v831 = vunpack.c.l.b16 %v799
  %v832 = vpack.c.b16 %v817, %v816
  %v833 = vpack.c.b16 %v819, %v818
  %v834 = vpack.c.b16 %v821, %v820
  %v835 = vpack.c.b16 %v823, %v822
  %v836 = vpack.c.b16 %v825, %v824
  %v837 = vpack.c.b16 %v827, %v826
  %v838 = vpack.c.b16 %v829, %v828
  %v839 = vpack.c.b16 %v831, %v830
  %848 = vmatprep.subr.bf16.mxu0 0
  %849 = vmatpush1.bf16.msra.mxu0 %v839
  %850 = vmatprep.subr.bf16.mxu0 0
  %851 = vmatpush1.bf16.msra.mxu0 %v838
  %852 = vmatprep.subr.bf16.mxu0 0
  %853 = vmatpush1.bf16.msra.mxu0 %v837
  %854 = vmatprep.subr.bf16.mxu0 0
  %855 = vmatpush1.bf16.msra.mxu0 %v836
  %856 = vmatprep.subr.bf16.mxu0 0
  %857 = vmatpush1.bf16.msra.mxu0 %v835
  %858 = vmatprep.subr.bf16.mxu0 0
  %859 = vmatpush1.bf16.msra.mxu0 %v834
  %860 = vmatprep.subr.bf16.mxu0 0
  %861 = vmatpush1.bf16.msra.mxu0 %v833
  %862 = vmatprep.subr.bf16.mxu0 0
  %863 = vmatpush1.bf16.msra.mxu0 %v832
  %864 = vmatprep.subr.bf16.mxu0 0
  %865 = vmatpush2.bf16.msra.mxu0 0
  %866 = vmatprep.subr.bf16.mxu0 0
  %867 = vmatpush2.bf16.msra.mxu0 0
  %868 = vmatprep.subr.bf16.mxu0 0
  %869 = vmatpush2.bf16.msra.mxu0 0
  %870 = vmatprep.subr.bf16.mxu0 0
  %871 = vmatpush2.bf16.msra.mxu0 0
  %872 = vmatprep.subr.bf16.mxu0 0
  %873 = vmatpush2.bf16.msra.mxu0 0
  %874 = vmatprep.subr.bf16.mxu0 0
  %875 = vmatpush2.bf16.msra.mxu0 0
  %876 = vmatprep.subr.bf16.mxu0 0
  %877 = vmatpush2.bf16.msra.mxu0 0
  %878 = vmatprep.subr.bf16.mxu0 0
  %879 = vmatpush2.bf16.msra.mxu0 0
  %880 = vmatprep.mubr.bf16.mxu0 0
  %881 = vmatmul.mubr.bf16.gmra.mxu0 %v776
  %v882 = vpop.f32.mrf.mxu0
  %v883 = vadd.f32 0.0, %v882
  %v884 = vpop.f32.mrf.mxu0
  %v885 = vpop.f32.mrf.mxu0
  %v886 = vadd.f32 0.0, %v885
  %v887 = vpop.f32.mrf.mxu0
  %888 = vmatprep.mubr.bf16.mxu0 0
  %889 = vmatmul.mubr.bf16.gmra.mxu0 %v777
  %v890 = vpop.f32.mrf.mxu0
  %v891 = vadd.f32 0.0, %v890
  %v892 = vpop.f32.mrf.mxu0
  %v893 = vpop.f32.mrf.mxu0
  %v894 = vadd.f32 0.0, %v893
  %v895 = vpop.f32.mrf.mxu0
  %896 = vmatprep.mubr.bf16.mxu0 0
  %897 = vmatmul.mubr.bf16.gmra.mxu0 %v778
  %v898 = vpop.f32.mrf.mxu0
  %v899 = vadd.f32 0.0, %v898
  %v900 = vpop.f32.mrf.mxu0
  %v901 = vpop.f32.mrf.mxu0
  %v902 = vadd.f32 0.0, %v901
  %v903 = vpop.f32.mrf.mxu0
  %904 = vmatprep.mubr.bf16.mxu0 0
  %905 = vmatmul.mubr.bf16.gmra.mxu0 %v779
  %v906 = vpop.f32.mrf.mxu0
  %v907 = vadd.f32 0.0, %v906
  %v908 = vpop.f32.mrf.mxu0
  %v909 = vpop.f32.mrf.mxu0
  %v910 = vadd.f32 0.0, %v909
  %v911 = vpop.f32.mrf.mxu0
  %912 = vmatprep.mubr.bf16.mxu0 0
  %913 = vmatmul.mubr.bf16.gmra.mxu0 %v780
  %v914 = vpop.f32.mrf.mxu0
  %v915 = vadd.f32 0.0, %v914
  %v916 = vpop.f32.mrf.mxu0
  %v917 = vpop.f32.mrf.mxu0
  %v918 = vadd.f32 0.0, %v917
  %v919 = vpop.f32.mrf.mxu0
  %920 = vmatprep.mubr.bf16.mxu0 0
  %921 = vmatmul.mubr.bf16.gmra.mxu0 %v781
  %v922 = vpop.f32.mrf.mxu0
  %v923 = vadd.f32 0.0, %v922
  %v924 = vpop.f32.mrf.mxu0
  %v925 = vpop.f32.mrf.mxu0
  %v926 = vadd.f32 0.0, %v925
  %v927 = vpop.f32.mrf.mxu0
  %928 = vmatprep.mubr.bf16.mxu0 0
  %929 = vmatmul.mubr.bf16.gmra.mxu0 %v782
  %v930 = vpop.f32.mrf.mxu0
  %v931 = vadd.f32 0.0, %v930
  %v932 = vpop.f32.mrf.mxu0
  %v933 = vpop.f32.mrf.mxu0
  %v934 = vadd.f32 0.0, %v933
  %v935 = vpop.f32.mrf.mxu0
  %936 = vmatprep.mubr.bf16.mxu0 0
  %937 = vmatmul.mubr.bf16.gmra.mxu0 %v783
  %v938 = vpop.f32.mrf.mxu0
  %v939 = vadd.f32 0.0, %v938
  %v940 = vpop.f32.mrf.mxu0
  %v941 = vpop.f32.mrf.mxu0
  %v942 = vadd.f32 0.0, %v941
  %v943 = vpop.f32.mrf.mxu0
  %944 = vdwg.mxu0
  %v945 = vld [vmem:[%s6] sm:$0x1]
  %946 = vmatprep.subr.bf16.mxu0 0
  %947 = vmatpush1.bf16.xpose.msra.mxu0 %v783
  %948 = vmatprep.subr.bf16.mxu0 0
  %949 = vmatpush1.bf16.xpose.msra.mxu0 %v782
  %950 = vmatprep.subr.bf16.mxu0 0
  %951 = vmatpush1.bf16.xpose.msra.mxu0 %v781
  %952 = vmatprep.subr.bf16.mxu0 0
  %953 = vmatpush1.bf16.xpose.msra.mxu0 %v780
  %954 = vmatprep.subr.bf16.mxu0 0
  %955 = vmatpush1.bf16.xpose.msra.mxu0 %v779
  %956 = vmatprep.subr.bf16.mxu0 0
  %957 = vmatpush1.bf16.xpose.msra.mxu0 %v778
  %958 = vmatprep.subr.bf16.mxu0 0
  %959 = vmatpush1.bf16.xpose.msra.mxu0 %v777
  %960 = vmatprep.subr.bf16.mxu0 0
  %961 = vmatpush1.bf16.xpose.msra.mxu0 %v776
  %962 = vmatprep.subr.bf16.mxu0 0
  %963 = vmatpush2.bf16.xpose.msra.mxu0 0
  %964 = vmatprep.subr.bf16.mxu0 0
  %965 = vmatpush2.bf16.xpose.msra.mxu0 0
  %966 = vmatprep.subr.bf16.mxu0 0
  %967 = vmatpush2.bf16.xpose.msra.mxu0 0
  %968 = vmatprep.subr.bf16.mxu0 0
  %969 = vmatpush2.bf16.xpose.msra.mxu0 0
  %970 = vmatprep.subr.bf16.mxu0 0
  %971 = vmatpush2.bf16.xpose.msra.mxu0 0
  %972 = vmatprep.subr.bf16.mxu0 0
  %973 = vmatpush2.bf16.xpose.msra.mxu0 0
  %974 = vmatprep.subr.bf16.mxu0 0
  %975 = vmatpush2.bf16.xpose.msra.mxu0 0
  %976 = vmatprep.subr.bf16.mxu0 0
  %977 = vmatpush2.bf16.xpose.msra.mxu0 0
  %978 = vmatprep.mubr.bf16.mxu0 0
  %979 = vmatmul.mubr.bf16.gmra.mxu0 %v945
  %v980 = vpop.f32.mrf.mxu0
  %v981 = vadd.f32 0.0, %v980
  %v982 = vpop.f32.mrf.mxu0
  %v983 = vpop.f32.mrf.mxu0
  %v984 = vpop.f32.mrf.mxu0
  %985 = vdwg.mxu0
  %987 = vset.pattern.permute.xlu0 32
  %988 = vperm.xlu0 %987, %v883
  %v989 = vpop.permute.xlu0 %988
  %992 = vset.pattern.permute.xlu0 32
  %993 = vperm.xlu0 %992, %v886
  %v994 = vpop.permute.xlu0 %993
  %997 = vset.pattern.permute.xlu0 32
  %998 = vperm.xlu0 %997, %v891
  %v999 = vpop.permute.xlu0 %998
  %1002 = vset.pattern.permute.xlu0 32
  %1003 = vperm.xlu0 %1002, %v894
  %v1004 = vpop.permute.xlu0 %1003
  %1007 = vset.pattern.permute.xlu0 32
  %1008 = vperm.xlu0 %1007, %v899
  %v1009 = vpop.permute.xlu0 %1008
  %1012 = vset.pattern.permute.xlu0 32
  %1013 = vperm.xlu0 %1012, %v902
  %v1014 = vpop.permute.xlu0 %1013
  %1017 = vset.pattern.permute.xlu0 32
  %1018 = vperm.xlu0 %1017, %v907
  %v1019 = vpop.permute.xlu0 %1018
  %1022 = vset.pattern.permute.xlu0 32
  %1023 = vperm.xlu0 %1022, %v910
  %v1024 = vpop.permute.xlu0 %1023
  %1027 = vset.pattern.permute.xlu0 32
  %1028 = vperm.xlu0 %1027, %v915
  %v1029 = vpop.permute.xlu0 %1028
  %1032 = vset.pattern.permute.xlu0 32
  %1033 = vperm.xlu0 %1032, %v918
  %v1034 = vpop.permute.xlu0 %1033
  %1037 = vset.pattern.permute.xlu0 32
  %1038 = vperm.xlu0 %1037, %v923
  %v1039 = vpop.permute.xlu0 %1038
  %1042 = vset.pattern.permute.xlu0 32
  %1043 = vperm.xlu0 %1042, %v926
  %v1044 = vpop.permute.xlu0 %1043
  %1047 = vset.pattern.permute.xlu0 32
  %1048 = vperm.xlu0 %1047, %v931
  %v1049 = vpop.permute.xlu0 %1048
  %1052 = vset.pattern.permute.xlu0 32
  %1053 = vperm.xlu0 %1052, %v934
  %v1054 = vpop.permute.xlu0 %1053
  %1057 = vset.pattern.permute.xlu0 32
  %1058 = vperm.xlu0 %1057, %v939
  %v1059 = vpop.permute.xlu0 %1058
  %1062 = vset.pattern.permute.xlu0 32
  %1063 = vperm.xlu0 %1062, %v942
  %v1064 = vpop.permute.xlu0 %1063
  %v1066 = vlaneseq
  %v1067 = vshrl.u32 %v1066, 7
  %v1068 = vsub.s32 0, %v1067
  %v1069 = vrot.slane %v981, %v1068
  %v1070 = vadd.f32 %v989, %v1069
  %v1071 = vadd.f32 %v994, %v1069
  %v1072 = vadd.f32 %v999, %v1069
  %v1073 = vadd.f32 %v1004, %v1069
  %v1074 = vadd.f32 %v1009, %v1069
  %v1075 = vadd.f32 %v1014, %v1069
  %v1076 = vadd.f32 %v1019, %v1069
  %v1077 = vadd.f32 %v1024, %v1069
  %v1078 = vadd.f32 %v1029, %v1069
  %v1079 = vadd.f32 %v1034, %v1069
  %v1080 = vadd.f32 %v1039, %v1069
  %v1081 = vadd.f32 %v1044, %v1069
  %v1082 = vadd.f32 %v1049, %v1069
  %v1083 = vadd.f32 %v1054, %v1069
  %v1084 = vadd.f32 %v1059, %v1069
  %v1085 = vadd.f32 %v1064, %v1069
  %vm1086 = vcmp.ge.f32.partialorder %v1070, 0.0
  %vm1087 = vcmp.ge.f32.partialorder %v1071, 0.0
  %vm1088 = vcmp.ge.f32.partialorder %v1072, 0.0
  %vm1089 = vcmp.ge.f32.partialorder %v1073, 0.0
  %vm1090 = vcmp.ge.f32.partialorder %v1074, 0.0
  %vm1091 = vcmp.ge.f32.partialorder %v1075, 0.0
  %vm1092 = vcmp.ge.f32.partialorder %v1076, 0.0
  %vm1093 = vcmp.ge.f32.partialorder %v1077, 0.0
  %vm1094 = vcmp.ge.f32.partialorder %v1078, 0.0
  %vm1095 = vcmp.ge.f32.partialorder %v1079, 0.0
  %vm1096 = vcmp.ge.f32.partialorder %v1080, 0.0
  %vm1097 = vcmp.ge.f32.partialorder %v1081, 0.0
  %vm1098 = vcmp.ge.f32.partialorder %v1082, 0.0
  %vm1099 = vcmp.ge.f32.partialorder %v1083, 0.0
  %vm1100 = vcmp.ge.f32.partialorder %v1084, 0.0
  %vm1101 = vcmp.ge.f32.partialorder %v1085, 0.0
  %v1102 = vmul.f32 %v1070, 0.2
  %v1103 = vmul.f32 %v1071, 0.2
  %v1104 = vmul.f32 %v1072, 0.2
  %v1105 = vmul.f32 %v1073, 0.2
  %v1106 = vmul.f32 %v1074, 0.2
  %v1107 = vmul.f32 %v1075, 0.2
  %v1108 = vmul.f32 %v1076, 0.2
  %v1109 = vmul.f32 %v1077, 0.2
  %v1110 = vmul.f32 %v1078, 0.2
  %v1111 = vmul.f32 %v1079, 0.2
  %v1112 = vmul.f32 %v1080, 0.2
  %v1113 = vmul.f32 %v1081, 0.2
  %v1114 = vmul.f32 %v1082, 0.2
  %v1115 = vmul.f32 %v1083, 0.2
  %v1116 = vmul.f32 %v1084, 0.2
  %v1117 = vmul.f32 %v1085, 0.2
  %v1118 = vsel %vm1086, %v1070, %v1102
  %v1119 = vsel %vm1087, %v1071, %v1103
  %v1120 = vsel %vm1088, %v1072, %v1104
  %v1121 = vsel %vm1089, %v1073, %v1105
  %v1122 = vsel %vm1090, %v1074, %v1106
  %v1123 = vsel %vm1091, %v1075, %v1107
  %v1124 = vsel %vm1092, %v1076, %v1108
  %v1125 = vsel %vm1093, %v1077, %v1109
  %v1126 = vsel %vm1094, %v1078, %v1110
  %v1127 = vsel %vm1095, %v1079, %v1111
  %v1128 = vsel %vm1096, %v1080, %v1112
  %v1129 = vsel %vm1097, %v1081, %v1113
  %v1130 = vsel %vm1098, %v1082, %v1114
  %v1131 = vsel %vm1099, %v1083, %v1115
  %v1132 = vsel %vm1100, %v1084, %v1116
  %v1133 = vsel %vm1101, %v1085, %v1117
  %v1134 = vsel %vm50, %v1118, -1e+30
  %v1135 = vsel %vm51, %v1119, -1e+30
  %v1136 = vsel %vm52, %v1120, -1e+30
  %v1137 = vsel %vm53, %v1121, -1e+30
  %v1138 = vsel %vm54, %v1122, -1e+30
  %v1139 = vsel %vm55, %v1123, -1e+30
  %v1140 = vsel %vm56, %v1124, -1e+30
  %v1141 = vsel %vm57, %v1125, -1e+30
  %v1142 = vsel %vm58, %v1126, -1e+30
  %v1143 = vsel %vm59, %v1127, -1e+30
  %v1144 = vsel %vm60, %v1128, -1e+30
  %v1145 = vsel %vm61, %v1129, -1e+30
  %v1146 = vsel %vm62, %v1130, -1e+30
  %v1147 = vsel %vm63, %v1131, -1e+30
  %v1148 = vsel %vm64, %v1132, -1e+30
  %v1149 = vsel %vm65, %v1133, -1e+30
  %1150 = vmax.xlane.f32.xlu0 %v1134
  %v1151 = vpop.xlane.xlu0 %1150
  %1152 = vmax.xlane.f32.xlu0 %v1135
  %v1153 = vpop.xlane.xlu0 %1152
  %1154 = vmax.xlane.f32.xlu0 %v1136
  %v1155 = vpop.xlane.xlu0 %1154
  %1156 = vmax.xlane.f32.xlu0 %v1137
  %v1157 = vpop.xlane.xlu0 %1156
  %1158 = vmax.xlane.f32.xlu0 %v1138
  %v1159 = vpop.xlane.xlu0 %1158
  %1160 = vmax.xlane.f32.xlu0 %v1139
  %v1161 = vpop.xlane.xlu0 %1160
  %1162 = vmax.xlane.f32.xlu0 %v1140
  %v1163 = vpop.xlane.xlu0 %1162
  %1164 = vmax.xlane.f32.xlu0 %v1141
  %v1165 = vpop.xlane.xlu0 %1164
  %1166 = vmax.xlane.f32.xlu0 %v1142
  %v1167 = vpop.xlane.xlu0 %1166
  %1168 = vmax.xlane.f32.xlu0 %v1143
  %v1169 = vpop.xlane.xlu0 %1168
  %1170 = vmax.xlane.f32.xlu0 %v1144
  %v1171 = vpop.xlane.xlu0 %1170
  %1172 = vmax.xlane.f32.xlu0 %v1145
  %v1173 = vpop.xlane.xlu0 %1172
  %1174 = vmax.xlane.f32.xlu0 %v1146
  %v1175 = vpop.xlane.xlu0 %1174
  %1176 = vmax.xlane.f32.xlu0 %v1147
  %v1177 = vpop.xlane.xlu0 %1176
  %1178 = vmax.xlane.f32.xlu0 %v1148
  %v1179 = vpop.xlane.xlu0 %1178
  %1180 = vmax.xlane.f32.xlu0 %v1149
  %v1181 = vpop.xlane.xlu0 %1180
  %v1182 = vsub.f32 %v1134, %v1151
  %v1183 = vsub.f32 %v1135, %v1153
  %v1184 = vsub.f32 %v1136, %v1155
  %v1185 = vsub.f32 %v1137, %v1157
  %v1186 = vsub.f32 %v1138, %v1159
  %v1187 = vsub.f32 %v1139, %v1161
  %v1188 = vsub.f32 %v1140, %v1163
  %v1189 = vsub.f32 %v1141, %v1165
  %v1190 = vsub.f32 %v1142, %v1167
  %v1191 = vsub.f32 %v1143, %v1169
  %v1192 = vsub.f32 %v1144, %v1171
  %v1193 = vsub.f32 %v1145, %v1173
  %v1194 = vsub.f32 %v1146, %v1175
  %v1195 = vsub.f32 %v1147, %v1177
  %v1196 = vsub.f32 %v1148, %v1179
  %v1197 = vsub.f32 %v1149, %v1181
  %v1198 = vmul.f32 %v1182, 1.442695
  %v1199 = vpow.pop %v1198
  %v1200 = vmul.f32 %v1183, 1.442695
  %v1201 = vpow.pop %v1200
  %v1202 = vmul.f32 %v1184, 1.442695
  %v1203 = vpow.pop %v1202
  %v1204 = vmul.f32 %v1185, 1.442695
  %v1205 = vpow.pop %v1204
  %v1206 = vmul.f32 %v1186, 1.442695
  %v1207 = vpow.pop %v1206
  %v1208 = vmul.f32 %v1187, 1.442695
  %v1209 = vpow.pop %v1208
  %v1210 = vmul.f32 %v1188, 1.442695
  %v1211 = vpow.pop %v1210
  %v1212 = vmul.f32 %v1189, 1.442695
  %v1213 = vpow.pop %v1212
  %v1214 = vmul.f32 %v1190, 1.442695
  %v1215 = vpow.pop %v1214
  %v1216 = vmul.f32 %v1191, 1.442695
  %v1217 = vpow.pop %v1216
  %v1218 = vmul.f32 %v1192, 1.442695
  %v1219 = vpow.pop %v1218
  %v1220 = vmul.f32 %v1193, 1.442695
  %v1221 = vpow.pop %v1220
  %v1222 = vmul.f32 %v1194, 1.442695
  %v1223 = vpow.pop %v1222
  %v1224 = vmul.f32 %v1195, 1.442695
  %v1225 = vpow.pop %v1224
  %v1226 = vmul.f32 %v1196, 1.442695
  %v1227 = vpow.pop %v1226
  %v1228 = vmul.f32 %v1197, 1.442695
  %v1229 = vpow.pop %v1228
  %1230 = vadd.xlane.f32.xlu0 %v1199
  %v1231 = vpop.xlane.xlu0 %1230
  %1232 = vadd.xlane.f32.xlu0 %v1201
  %v1233 = vpop.xlane.xlu0 %1232
  %1234 = vadd.xlane.f32.xlu0 %v1203
  %v1235 = vpop.xlane.xlu0 %1234
  %1236 = vadd.xlane.f32.xlu0 %v1205
  %v1237 = vpop.xlane.xlu0 %1236
  %1238 = vadd.xlane.f32.xlu0 %v1207
  %v1239 = vpop.xlane.xlu0 %1238
  %1240 = vadd.xlane.f32.xlu0 %v1209
  %v1241 = vpop.xlane.xlu0 %1240
  %1242 = vadd.xlane.f32.xlu0 %v1211
  %v1243 = vpop.xlane.xlu0 %1242
  %1244 = vadd.xlane.f32.xlu0 %v1213
  %v1245 = vpop.xlane.xlu0 %1244
  %1246 = vadd.xlane.f32.xlu0 %v1215
  %v1247 = vpop.xlane.xlu0 %1246
  %1248 = vadd.xlane.f32.xlu0 %v1217
  %v1249 = vpop.xlane.xlu0 %1248
  %1250 = vadd.xlane.f32.xlu0 %v1219
  %v1251 = vpop.xlane.xlu0 %1250
  %1252 = vadd.xlane.f32.xlu0 %v1221
  %v1253 = vpop.xlane.xlu0 %1252
  %1254 = vadd.xlane.f32.xlu0 %v1223
  %v1255 = vpop.xlane.xlu0 %1254
  %1256 = vadd.xlane.f32.xlu0 %v1225
  %v1257 = vpop.xlane.xlu0 %1256
  %1258 = vadd.xlane.f32.xlu0 %v1227
  %v1259 = vpop.xlane.xlu0 %1258
  %1260 = vadd.xlane.f32.xlu0 %v1229
  %v1261 = vpop.xlane.xlu0 %1260
  %v1262 = vrcp.pop %v1231
  %v1263 = vrcp.pop %v1233
  %v1264 = vrcp.pop %v1235
  %v1265 = vrcp.pop %v1237
  %v1266 = vrcp.pop %v1239
  %v1267 = vrcp.pop %v1241
  %v1268 = vrcp.pop %v1243
  %v1269 = vrcp.pop %v1245
  %v1270 = vrcp.pop %v1247
  %v1271 = vrcp.pop %v1249
  %v1272 = vrcp.pop %v1251
  %v1273 = vrcp.pop %v1253
  %v1274 = vrcp.pop %v1255
  %v1275 = vrcp.pop %v1257
  %v1276 = vrcp.pop %v1259
  %v1277 = vrcp.pop %v1261
  %v1278 = vmul.f32 %v1199, %v1262
  %v1279 = vmul.f32 %v1201, %v1263
  %v1280 = vmul.f32 %v1203, %v1264
  %v1281 = vmul.f32 %v1205, %v1265
  %v1282 = vmul.f32 %v1207, %v1266
  %v1283 = vmul.f32 %v1209, %v1267
  %v1284 = vmul.f32 %v1211, %v1268
  %v1285 = vmul.f32 %v1213, %v1269
  %v1286 = vmul.f32 %v1215, %v1270
  %v1287 = vmul.f32 %v1217, %v1271
  %v1288 = vmul.f32 %v1219, %v1272
  %v1289 = vmul.f32 %v1221, %v1273
  %v1290 = vmul.f32 %v1223, %v1274
  %v1291 = vmul.f32 %v1225, %v1275
  %v1292 = vmul.f32 %v1227, %v1276
  %v1293 = vmul.f32 %v1229, %v1277
  %v1294 = vpack.c.bf16 %v1279, %v1278
  %v1295 = vpack.c.bf16 %v1281, %v1280
  %v1296 = vpack.c.bf16 %v1283, %v1282
  %v1297 = vpack.c.bf16 %v1285, %v1284
  %v1298 = vpack.c.bf16 %v1287, %v1286
  %v1299 = vpack.c.bf16 %v1289, %v1288
  %v1300 = vpack.c.bf16 %v1291, %v1290
  %v1301 = vpack.c.bf16 %v1293, %v1292
  %v1302 = vpack.c.bf16 %v886, %v883
  %v1303 = vpack.c.bf16 %v894, %v891
  %v1304 = vpack.c.bf16 %v902, %v899
  %v1305 = vpack.c.bf16 %v910, %v907
  %v1306 = vpack.c.bf16 %v918, %v915
  %v1307 = vpack.c.bf16 %v926, %v923
  %v1308 = vpack.c.bf16 %v934, %v931
  %v1309 = vpack.c.bf16 %v942, %v939
  %v1310 = vld [vmem:[%s7] sm:$0x1]
  %v1312 = vlaneseq
  %v1313 = vshrl.u32 %v1312, 7
  %v1314 = vsub.s32 0, %v1313
  %v1315 = vrot.slane %v1310, %v1314
  %1317 = vmatprep.subr.bf16.mxu0 0
  %1318 = vmatpush1.bf16.msra.mxu0 %v1309
  %1319 = vmatprep.subr.bf16.mxu0 0
  %1320 = vmatpush1.bf16.msra.mxu0 %v1308
  %1321 = vmatprep.subr.bf16.mxu0 0
  %1322 = vmatpush1.bf16.msra.mxu0 %v1307
  %1323 = vmatprep.subr.bf16.mxu0 0
  %1324 = vmatpush1.bf16.msra.mxu0 %v1306
  %1325 = vmatprep.subr.bf16.mxu0 0
  %1326 = vmatpush1.bf16.msra.mxu0 %v1305
  %1327 = vmatprep.subr.bf16.mxu0 0
  %1328 = vmatpush1.bf16.msra.mxu0 %v1304
  %1329 = vmatprep.subr.bf16.mxu0 0
  %1330 = vmatpush1.bf16.msra.mxu0 %v1303
  %1331 = vmatprep.subr.bf16.mxu0 0
  %1332 = vmatpush1.bf16.msra.mxu0 %v1302
  %1333 = vmatprep.subr.bf16.mxu0 0
  %1334 = vmatpush2.bf16.msra.mxu0 0
  %1335 = vmatprep.subr.bf16.mxu0 0
  %1336 = vmatpush2.bf16.msra.mxu0 0
  %1337 = vmatprep.subr.bf16.mxu0 0
  %1338 = vmatpush2.bf16.msra.mxu0 0
  %1339 = vmatprep.subr.bf16.mxu0 0
  %1340 = vmatpush2.bf16.msra.mxu0 0
  %1341 = vmatprep.subr.bf16.mxu0 0
  %1342 = vmatpush2.bf16.msra.mxu0 0
  %1343 = vmatprep.subr.bf16.mxu0 0
  %1344 = vmatpush2.bf16.msra.mxu0 0
  %1345 = vmatprep.subr.bf16.mxu0 0
  %1346 = vmatpush2.bf16.msra.mxu0 0
  %1347 = vmatprep.subr.bf16.mxu0 0
  %1348 = vmatpush2.bf16.msra.mxu0 0
  %1349 = vmatprep.mubr.bf16.mxu0 0
  %1350 = vmatmul.mubr.bf16.gmra.mxu0 %v1294
  %v1351 = vpop.f32.mrf.mxu0
  %v1352 = vadd.f32 %v1315, %v1351
  %v1353 = vpop.f32.mrf.mxu0
  %v1354 = vpop.f32.mrf.mxu0
  %v1355 = vadd.f32 %v1315, %v1354
  %v1356 = vpop.f32.mrf.mxu0
  %1357 = vmatprep.mubr.bf16.mxu0 0
  %1358 = vmatmul.mubr.bf16.gmra.mxu0 %v1295
  %v1359 = vpop.f32.mrf.mxu0
  %v1360 = vadd.f32 %v1315, %v1359
  %v1361 = vpop.f32.mrf.mxu0
  %v1362 = vpop.f32.mrf.mxu0
  %v1363 = vadd.f32 %v1315, %v1362
  %v1364 = vpop.f32.mrf.mxu0
  %1365 = vmatprep.mubr.bf16.mxu0 0
  %1366 = vmatmul.mubr.bf16.gmra.mxu0 %v1296
  %v1367 = vpop.f32.mrf.mxu0
  %v1368 = vadd.f32 %v1315, %v1367
  %v1369 = vpop.f32.mrf.mxu0
  %v1370 = vpop.f32.mrf.mxu0
  %v1371 = vadd.f32 %v1315, %v1370
  %v1372 = vpop.f32.mrf.mxu0
  %1373 = vmatprep.mubr.bf16.mxu0 0
  %1374 = vmatmul.mubr.bf16.gmra.mxu0 %v1297
  %v1375 = vpop.f32.mrf.mxu0
  %v1376 = vadd.f32 %v1315, %v1375
  %v1377 = vpop.f32.mrf.mxu0
  %v1378 = vpop.f32.mrf.mxu0
  %v1379 = vadd.f32 %v1315, %v1378
  %v1380 = vpop.f32.mrf.mxu0
  %1381 = vmatprep.mubr.bf16.mxu0 0
  %1382 = vmatmul.mubr.bf16.gmra.mxu0 %v1298
  %v1383 = vpop.f32.mrf.mxu0
  %v1384 = vadd.f32 %v1315, %v1383
  %v1385 = vpop.f32.mrf.mxu0
  %v1386 = vpop.f32.mrf.mxu0
  %v1387 = vadd.f32 %v1315, %v1386
  %v1388 = vpop.f32.mrf.mxu0
  %1389 = vmatprep.mubr.bf16.mxu0 0
  %1390 = vmatmul.mubr.bf16.gmra.mxu0 %v1299
  %v1391 = vpop.f32.mrf.mxu0
  %v1392 = vadd.f32 %v1315, %v1391
  %v1393 = vpop.f32.mrf.mxu0
  %v1394 = vpop.f32.mrf.mxu0
  %v1395 = vadd.f32 %v1315, %v1394
  %v1396 = vpop.f32.mrf.mxu0
  %1397 = vmatprep.mubr.bf16.mxu0 0
  %1398 = vmatmul.mubr.bf16.gmra.mxu0 %v1300
  %v1399 = vpop.f32.mrf.mxu0
  %v1400 = vadd.f32 %v1315, %v1399
  %v1401 = vpop.f32.mrf.mxu0
  %v1402 = vpop.f32.mrf.mxu0
  %v1403 = vadd.f32 %v1315, %v1402
  %v1404 = vpop.f32.mrf.mxu0
  %1405 = vmatprep.mubr.bf16.mxu0 0
  %1406 = vmatmul.mubr.bf16.gmra.mxu0 %v1301
  %v1407 = vpop.f32.mrf.mxu0
  %v1408 = vadd.f32 %v1315, %v1407
  %v1409 = vpop.f32.mrf.mxu0
  %v1410 = vpop.f32.mrf.mxu0
  %v1411 = vadd.f32 %v1315, %v1410
  %v1412 = vpop.f32.mrf.mxu0
  %1413 = vdwg.mxu0
  %1414 = vst [vmem:[%s8] sm:$0xff] %v1352
  %1415 = vst [vmem:[%s8 + $0x8] sm:$0xff] %v1355
  %1416 = vst [vmem:[%s8 + $0x10] sm:$0xff] %v1360
  %1417 = vst [vmem:[%s8 + $0x18] sm:$0xff] %v1363
  %1418 = vst [vmem:[%s8 + $0x20] sm:$0xff] %v1368
  %1419 = vst [vmem:[%s8 + $0x28] sm:$0xff] %v1371
  %1420 = vst [vmem:[%s8 + $0x30] sm:$0xff] %v1376
  %1421 = vst [vmem:[%s8 + $0x38] sm:$0xff] %v1379
  %1422 = vst [vmem:[%s8 + $0x40] sm:$0xff] %v1384
  %1423 = vst [vmem:[%s8 + $0x48] sm:$0xff] %v1387
  %1424 = vst [vmem:[%s8 + $0x50] sm:$0xff] %v1392
  %1425 = vst [vmem:[%s8 + $0x58] sm:$0xff] %v1395
  %1426 = vst [vmem:[%s8 + $0x60] sm:$0xff] %v1400
  %1427 = vst [vmem:[%s8 + $0x68] sm:$0xff] %v1403
  %1428 = vst [vmem:[%s8 + $0x70] sm:$0xff] %v1408
  %1429 = vst [vmem:[%s8 + $0x78] sm:$0xff] %v1411
  // Predicated region
  $region34: #{gat_forward.1} parent=0 // pred_check
    _
  $region35: #{gat_forward.1} parent=0 // pred_check_branch
    %1431 = sbr.rel (0) target = $region37
  $region36: #{gat_forward.1} parent=0 // pred_region
    _
  $region37: #{gat_forward.1} parent=0 // pred_fallthru
    _
  // Predicated region
  $region38: #{gat_forward.1} parent=0 // pred_check
    _
  $region39: #{gat_forward.1} parent=0 // pred_check_branch
    %1433 = sbr.rel (0) target = $region41
  $region40: #{gat_forward.1} parent=0 // pred_region
    _
  $region41: #{gat_forward.1} parent=0 // pred_fallthru
    _

</llo_original>
